<compile_context>
chip_gen: v5e
topology: v5e:2x2
jax: 0.10.0
libtpu: 0.0.40
codegen_flags: <defaults>
</compile_context>

<pallas_src>
import jax
import jax.numpy as jnp
from jax.experimental import pallas as pl
from jax.experimental.pallas import tpu as pltpu


# ---------------------------------------------------------------------------
# small math helpers (all guaranteed Mosaic lowerings)
# ---------------------------------------------------------------------------

def _expm1_accurate(h):
    # expm1(h) == tanh(h/2) * (exp(h) + 1) exactly; no cancellation for small
    # |h| and only tanh/exp (EUP) primitives, so it lowers on every TPU gen.
    return jnp.tanh(0.5 * h) * (jnp.exp(h) + 1.0)


def _elu(h):
    # ELU(alpha=1); clamp the discarded branch so exp() never overflows.
    return jnp.where(h > 0.0, h, _expm1_accurate(jnp.minimum(h, 0.0)))


def _sigmoid(y):
    # Exact sigmoid — runs once per batch on a length-C vector, cost is nil.
    return 1.0 / (1.0 + jnp.exp(-y))


def _gate_from_pooled(pooled, w1_ref, b1_ref, w2_ref, b2_ref, channels_last):
    """fc1 -> ELU -> fc2 -> sigmoid in f32.

    channels_last: pooled (1,C),  w1 (C,Cr), b1 (1,Cr), w2 (Cr,C), b2 (1,C)
    spatial_last:  pooled (C,1),  w1 (Cr,C), b1 (Cr,1), w2 (C,Cr), b2 (C,1)
    (the wrapper passes transposed weights for spatial-last so the pooled
    column vector never needs an in-kernel relayout).
    """
    w1 = w1_ref[...].astype(jnp.float32)
    b1 = b1_ref[...].astype(jnp.float32)
    w2 = w2_ref[...].astype(jnp.float32)
    b2 = b2_ref[...].astype(jnp.float32)
    if channels_last:
        h = jnp.dot(pooled, w1, preferred_element_type=jnp.float32) + b1
        h = _elu(h)
        y = jnp.dot(h, w2, preferred_element_type=jnp.float32) + b2
    else:
        h = jnp.dot(w1, pooled, preferred_element_type=jnp.float32) + b1
        h = _elu(h)
        y = jnp.dot(w2, h, preferred_element_type=jnp.float32) + b2
    return _sigmoid(y)


# ---------------------------------------------------------------------------
# single-pass kernel: one (HW, C) / (C, HW) block per batch
# ---------------------------------------------------------------------------

def _make_whole_block_kernel(channels_last, HW, chunk, has_res, apply_relu):
    def kernel(*refs):
        if has_res:
            x_ref, res_ref, w1_ref, b1_ref, w2_ref, b2_ref, o_ref = refs
        else:
            x_ref, w1_ref, b1_ref, w2_ref, b2_ref, o_ref = refs
            res_ref = None

        # ---- squeeze: chunked f32 pool (no full-block f32 temporary) ----
        if channels_last:
            acc = jnp.zeros((1, x_ref.shape[1]), jnp.float32)
        else:
            acc = jnp.zeros((x_ref.shape[0], 1), jnp.float32)
        s = 0
        while s < HW:                       # static (trace-time) chunk loop
            n = min(chunk, HW - s)
            if channels_last:
                xs = x_ref[s:s + n, :].astype(jnp.float32)
                acc = acc + jnp.sum(xs, axis=0, keepdims=True)
            else:
                xs = x_ref[:, s:s + n].astype(jnp.float32)
                acc = acc + jnp.sum(xs, axis=1, keepdims=True)
            s += n
        pooled = acc * (1.0 / HW)

        # ---- excite (f32, once per batch) ----
        gate = _gate_from_pooled(pooled, w1_ref, b1_ref, w2_ref, b2_ref,
                                 channels_last)
        # Rescale in the activation dtype (halves vreg traffic for bf16 on
        # v6e/v7x; v5e promotes per-op internally — still mem-bound).
        scale = gate.astype(o_ref.dtype)

        # ---- rescale + fused residual add + ReLU, chunked ----
        s = 0
        while s < HW:
            n = min(chunk, HW - s)
            if channels_last:
                v = x_ref[s:s + n, :] * scale
                if has_res:
                    v = v + res_ref[s:s + n, :]
                if apply_relu:
                    v = jnp.maximum(v, 0)
                o_ref[s:s + n, :] = v.astype(o_ref.dtype)
            else:
                v = x_ref[:, s:s + n] * scale
                if has_res:
                    v = v + res_ref[:, s:s + n]
                if apply_relu:
                    v = jnp.maximum(v, 0)
                o_ref[:, s:s + n] = v.astype(o_ref.dtype)
            s += n

    return kernel


# ---------------------------------------------------------------------------
# two-pass tiled kernels (when one batch block exceeds the VMEM budget, or to
# get more pipeline steps when B is tiny): pass 1 pools + computes the gate,
# pass 2 streams HW tiles through the fused rescale.
# ---------------------------------------------------------------------------

def _make_pool_gate_kernel(channels_last, HW, thw):
    needs_mask = (HW % thw) != 0

    def kernel(x_ref, w1_ref, b1_ref, w2_ref, b2_ref, g_ref, acc_ref):
        j = pl.program_id(1)

        @pl.when(j == 0)
        def _init():
            acc_ref[...] = jnp.zeros_like(acc_ref)

        x = x_ref[...].astype(jnp.float32)
        if needs_mask:                      # ragged last spatial tile
            ax = 0 if channels_last else 1
            idx = jax.lax.broadcasted_iota(jnp.int32, x.shape, ax)
            x = jnp.where(j * thw + idx < HW, x, 0.0)
        if channels_last:
            acc_ref[...] += jnp.sum(x, axis=0, keepdims=True)
        else:
            acc_ref[...] += jnp.sum(x, axis=1, keepdims=True)

        @pl.when(j == pl.num_programs(1) - 1)
        def _finish():
            pooled = acc_ref[...] * (1.0 / HW)
            gate = _gate_from_pooled(pooled, w1_ref, b1_ref, w2_ref, b2_ref,
                                     channels_last)
            g_ref[...] = gate.astype(g_ref.dtype)

    return kernel


def _make_rescale_kernel(channels_last, has_res, apply_relu):
    del channels_last  # broadcasting works identically for both layouts

    def kernel(*refs):
        if has_res:
            x_ref, g_ref, res_ref, o_ref = refs
        else:
            x_ref, g_ref, o_ref = refs
            res_ref = None
        v = x_ref[...] * g_ref[...]
        if has_res:
            v = v + res_ref[...]
        if apply_relu:
            v = jnp.maximum(v, 0)
        o_ref[...] = v.astype(o_ref.dtype)

    return kernel


# ---------------------------------------------------------------------------
# wrapper
# ---------------------------------------------------------------------------

def _vmem_budget_bytes():
    # Physical VMEM per TensorCore minus headroom for Mosaic-internal scratch.
    # (64 MiB on v7x, 128 MiB on v5e/v6e.)
    try:
        phys = int(pltpu.get_tpu_info().vmem_capacity_bytes)
    except Exception:
        phys = 64 * 1024 * 1024             # conservative (v7x) default
    return max(phys - (8 << 20), 32 << 20)


def se_channel_gate(x, w1, b1, w2, b2, residual=None, *, data_format="NHWC",
                    apply_relu=None, alias_input=False,
                    force_tiled=False, hw_tile=None):
    """Fused SE channel gate (+ optional residual add + ReLU).

        g   = sigmoid(fc2(elu(fc1(mean_{H,W}(x)))))
        out = x * g                       (residual is None)
        out = relu(x * g + residual)      (residual given; relu by default)

    x / residual: (B,H,W,C) for "NHWC" or (B,C,H,W) for "NCHW". The input's
    native layout is used directly (free reshape to 3-D, never a transpose);
    pass NCHW for C=64 stages (HW is the lane axis there and is ~98% dense).
    Weights are stored (in, out): w1 (C, C//r), b1 (C//r,), w2 (C//r, C),
    b2 (C,), i.e. PyTorch Linear.weight transposed.

    alias_input=True writes the output in-place over x's buffer. Only use it
    if x is truly donated: the 3-D view passed to pallas_call is a *reshape
    view* of the caller's array, so aliasing clobbers x. It is ignored on the
    tiled (two-pass) path. force_tiled / hw_tile expose the two-pass HW-tiled
    path (useful on v7x when B per chip is tiny and more pipeline steps are
    worth one extra HBM read of x).
    """
    if data_format not in ("NHWC", "NCHW"):
        raise ValueError("data_format must be 'NHWC' or 'NCHW'")
    channels_last = data_format == "NHWC"
    if channels_last:
        B, H, W, C = x.shape
    else:
        B, C, H, W = x.shape
    HW = H * W
    Cr = w1.shape[1]
    assert w1.shape == (C, Cr) and w2.shape == (Cr, C)
    assert b1.shape == (Cr,) and b2.shape == (C,)
    has_res = residual is not None
    if has_res:
        assert residual.shape == x.shape and residual.dtype == x.dtype
    if apply_relu is None:
        apply_relu = has_res

    # 3-D views in the native layout — reshapes only, no transposes of x.
    if channels_last:
        x3 = x.reshape(B, HW, C)
        res3 = residual.reshape(B, HW, C) if has_res else None
        W1, B1 = w1, b1.reshape(1, Cr)
        W2, B2 = w2, b2.reshape(1, C)
    else:
        x3 = x.reshape(B, C, HW)
        res3 = residual.reshape(B, C, HW) if has_res else None
        # Transposed (tiny, one-time) weights -> column-form gate math, so the
        # pooled (C,1) vector never needs an in-kernel relayout.
        W1, B1 = w1.T, b1.reshape(Cr, 1)
        W2, B2 = w2.T, b2.reshape(C, 1)

    itemsize = x.dtype.itemsize
    weight_bytes = int(sum(int(a.size) * a.dtype.itemsize
                           for a in (W1, B1, W2, B2)))
    budget = _vmem_budget_bytes()

    chunk = max(1, min(HW, 512))
    block_bytes = HW * C * itemsize
    n_streams = 4 + (2 if has_res else 0)       # double-buffered x/out (+res)
    whole_need = (n_streams * block_bytes + 2 * weight_bytes
                  + 2 * chunk * C * 4 + (2 << 20))
    use_tiled = force_tiled or whole_need > budget

    if not use_tiled:
        # ---------------- single-pass, one batch block per grid step --------
        vmem_limit = int(min(max(whole_need, 16 << 20), budget))
        cost = pl.CostEstimate(
            flops=int(B * (HW * C * (2 + int(has_res) + int(apply_relu))
                           + 4 * C * Cr)),
            transcendentals=int(B * (2 * Cr + C)),
            bytes_accessed=int(B * HW * C * itemsize * (2 + int(has_res))
                               + weight_bytes))
        blk = (None,) + tuple(x3.shape[1:])
        xmap = lambda b: (b, 0, 0)

        def wspec(a):
            return pl.BlockSpec(a.shape, lambda b: (0, 0))

        in_specs = [pl.BlockSpec(blk, xmap)]
        args = [x3]
        if has_res:
            in_specs.append(pl.BlockSpec(blk, xmap))
            args.append(res3)
        # NOTE: constant index_maps -> the weight blocks are fetched once and
        # stay resident; the extra pipeline buffer is a few KiB.
        in_specs += [wspec(W1), wspec(B1), wspec(W2), wspec(B2)]
        args += [W1, B1, W2, B2]

        out3 = pl.pallas_call(
            _make_whole_block_kernel(channels_last, HW, chunk, has_res,
                                     apply_relu),
            out_shape=jax.ShapeDtypeStruct(x3.shape, x3.dtype),
            grid=(B,),
            in_specs=in_specs,
            out_specs=pl.BlockSpec(blk, xmap),
            compiler_params=pltpu.CompilerParams(
                dimension_semantics=("parallel",),   # batch across TCs (v7x)
                vmem_limit_bytes=vmem_limit),
            cost_estimate=cost,
            input_output_aliases=({0: 0} if alias_input else {}),
        )(*args)
        return out3.reshape(x.shape)

    # -------------------- two-pass HW-tiled path ----------------------------
    align = 8 if channels_last else 128          # sublane vs lane tiling
    if hw_tile is not None:
        thw = int(hw_tile)
    else:
        # >=512 spatial elements per tile (amortize ~0.35us/step) but small
        # enough that all double-buffered tile streams fit the VMEM budget.
        per_row = max(1, C * itemsize * 12)
        thw = min(HW, max(512, align), budget // per_row)
    thw = max(align, (min(thw, HW) // align) * align)
    n_hw = pl.cdiv(HW, thw)

    tile_bytes = thw * C * itemsize
    tiled_need = ((8 + (2 if has_res else 0)) * tile_bytes
                  + 2 * weight_bytes + 2 * thw * C * 4 + (2 << 20))
    vmem_limit = int(min(max(tiled_need, 16 << 20), budget))

    if channels_last:
        x_blk = (None, thw, C)
        x_map = lambda b, j: (b, j, 0)
        g_shape, g_blk = (B, 1, C), (None, 1, C)
        acc_shape = (1, C)
    else:
        x_blk = (None, C, thw)
        x_map = lambda b, j: (b, 0, j)
        g_shape, g_blk = (B, C, 1), (None, C, 1)
        acc_shape = (C, 1)
    g_map = lambda b, j: (b, 0, 0)

    def wspec(a):
        return pl.BlockSpec(a.shape, lambda b, j: (0, 0))

    # pass 1: pooled mean -> gate (reads x once, writes B*C gate values)
    cost1 = pl.CostEstimate(
        flops=int(B * (HW * C + 4 * C * Cr)),
        transcendentals=int(B * (2 * Cr + C)),
        bytes_accessed=int(B * HW * C * itemsize + weight_bytes
                           + B * C * itemsize))
    gate = pl.pallas_call(
        _make_pool_gate_kernel(channels_last, HW, thw),
        out_shape=jax.ShapeDtypeStruct(g_shape, x3.dtype),
        grid=(B, n_hw),
        in_specs=[pl.BlockSpec(x_blk, x_map),
                  wspec(W1), wspec(B1), wspec(W2), wspec(B2)],
        out_specs=pl.BlockSpec(g_blk, g_map),
        scratch_shapes=[pltpu.VMEM(acc_shape, jnp.float32)],
        compiler_params=pltpu.CompilerParams(
            dimension_semantics=("parallel", "arbitrary"),
            vmem_limit_bytes=vmem_limit),
        cost_estimate=cost1,
    )(x3, W1, B1, W2, B2)

    # pass 2: tiled rescale (+ residual + relu) — fully pipelined elementwise.
    in_specs = [pl.BlockSpec(x_blk, x_map), pl.BlockSpec(g_blk, g_map)]
    args = [x3, gate]
    if has_res:
        in_specs.append(pl.BlockSpec(x_blk, x_map))
        args.append(res3)
    cost2 = pl.CostEstimate(
        flops=int(B * HW * C * (1 + int(has_res) + int(apply_relu))),
        transcendentals=0,
        bytes_accessed=int(B * HW * C * itemsize * (2 + int(has_res))
                           + B * C * itemsize))
    out3 = pl.pallas_call(
        _make_rescale_kernel(channels_last, has_res, apply_relu),
        out_shape=jax.ShapeDtypeStruct(x3.shape, x3.dtype),
        grid=(B, n_hw),
        in_specs=in_specs,
        out_specs=pl.BlockSpec(x_blk, x_map),
        compiler_params=pltpu.CompilerParams(
            dimension_semantics=("parallel", "parallel"),
            vmem_limit_bytes=vmem_limit),
        cost_estimate=cost2,
    )(*args)
    return out3.reshape(x.shape)


# ---------------------------------------------------------------------------
# pure-JAX reference + test harness
# ---------------------------------------------------------------------------

def se_reference(x, w1, b1, w2, b2, residual=None, *, data_format="NHWC",
                 apply_relu=None):
    axes = (1, 2) if data_format == "NHWC" else (2, 3)
    pooled = jnp.mean(x.astype(jnp.float32), axis=axes)
    h = pooled @ w1 + b1
    h = jnp.where(h > 0, h, jnp.expm1(h))
    y = jax.nn.sigmoid(h @ w2 + b2).astype(x.dtype)
    scale = y[:, None, None, :] if data_format == "NHWC" else y[:, :, None, None]
    out = x * scale
    if residual is not None:
        out = out + residual
    if apply_relu is None:
        apply_relu = residual is not None
    if apply_relu:
        out = jnp.maximum(out, 0)
    return out


def _check(name, out, ref, tol):
    out = jnp.asarray(out, jnp.float32)
    ref = jnp.asarray(ref, jnp.float32)
    rel = float(jnp.max(jnp.abs(out - ref))) / (float(jnp.max(jnp.abs(ref))) + 1e-6)
    assert rel < tol, f"{name}: max rel err {rel:.3e} (tol {tol:.1e})"


if __name__ == "__main__":
    # High-precision reference matmuls; tolerance below still allows for the
    # MXU bf16-pass differences of the tiny gate matmuls (real layout /
    # broadcast bugs show up as order-1 errors).
    jax.config.update("jax_default_matmul_precision", "float32")
    root = jax.random.PRNGKey(0)

    def make_params(key, C, r):
        Cr = max(C // r, 1)
        k1, k2, k3, k4 = jax.random.split(key, 4)
        l1, l2 = 1.0 / (C ** 0.5), 1.0 / (Cr ** 0.5)
        return (jax.random.uniform(k1, (C, Cr), jnp.float32, -l1, l1),
                jax.random.uniform(k2, (Cr,), jnp.float32, -l1, l1),
                jax.random.uniform(k3, (Cr, C), jnp.float32, -l2, l2),
                jax.random.uniform(k4, (C,), jnp.float32, -l2, l2))

    # 1) NCHW, small C / wide HW (spatial-last, HW=256 on the lane axis).
    k1, k2, root = jax.random.split(root, 3)
    x = jax.random.normal(k1, (2, 4, 16, 16), jnp.float32)
    w1, b1, w2, b2 = make_params(k2, 4, 2)
    out = se_channel_gate(x, w1, b1, w2, b2, data_format="NCHW")
    jax.block_until_ready(out)
    _check("nchw_gate", out,
           se_reference(x, w1, b1, w2, b2, data_format="NCHW"), 1e-3)

    # 2) NHWC, C=128 (channels-last, unmasked lane-dense stores), fused
    #    residual add + ReLU tail.
    k1, k2, k3, root = jax.random.split(root, 4)
    x = jax.random.normal(k1, (2, 7, 7, 128), jnp.float32)
    res = jax.random.normal(k2, (2, 7, 7, 128), jnp.float32)
    w1, b1, w2, b2 = make_params(k3, 128, 16)
    out = se_channel_gate(x, w1, b1, w2, b2, residual=res, data_format="NHWC")
    jax.block_until_ready(out)
    _check("nhwc_fused", out,
           se_reference(x, w1, b1, w2, b2, res, data_format="NHWC"), 1e-3)

    # 3) Two-pass HW-tiled path (forced at a small shape; 4 spatial tiles).
    k1, k2, k3, root = jax.random.split(root, 4)
    x = jax.random.normal(k1, (2, 16, 16, 128), jnp.float32)
    res = jax.random.normal(k2, (2, 16, 16, 128), jnp.float32)
    w1, b1, w2, b2 = make_params(k3, 128, 16)
    out = se_channel_gate(x, w1, b1, w2, b2, residual=res, data_format="NHWC",
                          force_tiled=True, hw_tile=64)
    jax.block_until_ready(out)
    _check("nhwc_tiled", out,
           se_reference(x, w1, b1, w2, b2, res, data_format="NHWC"), 1e-3)

    # 4) bf16 activations at the HBM boundary (v5e item), spatial-last, tiled.
    k1, k2, root = jax.random.split(root, 3)
    x = jax.random.normal(k1, (2, 8, 32, 32), jnp.float32).astype(jnp.bfloat16)
    w1, b1, w2, b2 = make_params(k2, 8, 4)
    out = se_channel_gate(x, w1, b1, w2, b2, data_format="NCHW",
                          force_tiled=True, hw_tile=256)
    jax.block_until_ready(out)
    _check("nchw_bf16_tiled", out,
           se_reference(x, w1, b1, w2, b2, data_format="NCHW"), 3e-2)

    print("KERNEL_OK")
</pallas_src>

<mosaic_0001>
module attributes {stable_mosaic.version = 11 : i64} {
  func.func @kernel(%arg0: i32, %arg1: memref<1x4x256xf32, #tpu.memory_space<vmem>>, %arg2: memref<2x4xf32, #tpu.memory_space<vmem>>, %arg3: memref<2x1xf32, #tpu.memory_space<vmem>>, %arg4: memref<4x2xf32, #tpu.memory_space<vmem>>, %arg5: memref<4x1xf32, #tpu.memory_space<vmem>>, %arg6: memref<1x4x256xf32, #tpu.memory_space<vmem>>) attributes {dimension_semantics = [#tpu.dimension_semantics<parallel>], iteration_bounds = array<i64: 2>, scalar_prefetch = 0 : i64, scratch_operands = 0 : i64, tpu.core_type = #tpu.core_type<tc>, window_params = [{transform_indices = @transform_0, window_bounds = array<i64: 1, 4, 256>}, {pipeline_mode = #tpu.pipeline_mode<synchronous>, transform_indices = @transform_1, window_bounds = array<i64: 2, 4>}, {pipeline_mode = #tpu.pipeline_mode<synchronous>, transform_indices = @transform_2, window_bounds = array<i64: 2, 1>}, {pipeline_mode = #tpu.pipeline_mode<synchronous>, transform_indices = @transform_3, window_bounds = array<i64: 4, 2>}, {pipeline_mode = #tpu.pipeline_mode<synchronous>, transform_indices = @transform_4, window_bounds = array<i64: 4, 1>}, {transform_indices = @transform_5, window_bounds = array<i64: 1, 4, 256>}]} {
    %cst = arith.constant 0.000000e+00 : f32
    %0 = vector.broadcast %cst : f32 to vector<4x1xf32>
    %c0 = arith.constant 0 : index
    %c0_0 = arith.constant 0 : index
    %c0_1 = arith.constant 0 : index
    %1 = vector.load %arg1[%c0, %c0_0, %c0_1] : memref<1x4x256xf32, #tpu.memory_space<vmem>>, vector<1x4x256xf32>
    %2 = vector.shape_cast %1 : vector<1x4x256xf32> to vector<4x256xf32>
    %cst_2 = arith.constant dense<0.000000e+00> : vector<4xf32>
    %3 = vector.multi_reduction <add>, %2, %cst_2 [1] : vector<4x256xf32> to vector<4xf32>
    %4 = vector.shape_cast %3 : vector<4xf32> to vector<4x1xf32>
    %5 = arith.addf %0, %4 : vector<4x1xf32>
    %cst_3 = arith.constant 3.906250e-03 : f32
    %6 = vector.broadcast %cst_3 : f32 to vector<4x1xf32>
    %7 = arith.mulf %5, %6 : vector<4x1xf32>
    %c0_4 = arith.constant 0 : index
    %c0_5 = arith.constant 0 : index
    %8 = vector.load %arg2[%c0_4, %c0_5] : memref<2x4xf32, #tpu.memory_space<vmem>>, vector<2x4xf32>
    %c0_6 = arith.constant 0 : index
    %c0_7 = arith.constant 0 : index
    %9 = vector.load %arg3[%c0_6, %c0_7] : memref<2x1xf32, #tpu.memory_space<vmem>>, vector<2x1xf32>
    %c0_8 = arith.constant 0 : index
    %c0_9 = arith.constant 0 : index
    %10 = vector.load %arg4[%c0_8, %c0_9] : memref<4x2xf32, #tpu.memory_space<vmem>>, vector<4x2xf32>
    %c0_10 = arith.constant 0 : index
    %c0_11 = arith.constant 0 : index
    %11 = vector.load %arg5[%c0_10, %c0_11] : memref<4x1xf32, #tpu.memory_space<vmem>>, vector<4x1xf32>
    %cst_12 = arith.constant dense<0.000000e+00> : vector<2x1xf32>
    %12 = tpu.matmul %8, %7, %cst_12 {dimension_numbers = #tpu.dot_dimension_numbers<[1], [0], [0], [1], [0, 0, 1, 1], [], []>, precision = #tpu.contract_precision<fp32>} : vector<2x4xf32>, vector<4x1xf32>, vector<2x1xf32> -> vector<2x1xf32>
    %13 = arith.addf %12, %9 : vector<2x1xf32>
    %cst_13 = arith.constant 0.000000e+00 : f32
    %14 = vector.broadcast %cst_13 : f32 to vector<2x1xf32>
    %15 = arith.cmpf ogt, %13, %14 : vector<2x1xf32>
    %cst_14 = arith.constant 0.000000e+00 : f32
    %16 = vector.broadcast %cst_14 : f32 to vector<2x1xf32>
    %17 = arith.minimumf %13, %16 : vector<2x1xf32>
    %cst_15 = arith.constant 5.000000e-01 : f32
    %18 = vector.broadcast %cst_15 : f32 to vector<2x1xf32>
    %19 = arith.mulf %18, %17 : vector<2x1xf32>
    %20 = math.tanh %19 : vector<2x1xf32>
    %21 = math.exp %17 : vector<2x1xf32>
    %cst_16 = arith.constant 1.000000e+00 : f32
    %22 = vector.broadcast %cst_16 : f32 to vector<2x1xf32>
    %23 = arith.addf %21, %22 : vector<2x1xf32>
    %24 = arith.mulf %20, %23 : vector<2x1xf32>
    %25 = arith.select %15, %13, %24 : vector<2x1xi1>, vector<2x1xf32>
    %cst_17 = arith.constant dense<0.000000e+00> : vector<4x1xf32>
    %26 = tpu.matmul %10, %25, %cst_17 {dimension_numbers = #tpu.dot_dimension_numbers<[1], [0], [0], [1], [0, 0, 1, 1], [], []>, precision = #tpu.contract_precision<fp32>} : vector<4x2xf32>, vector<2x1xf32>, vector<4x1xf32> -> vector<4x1xf32>
    %27 = arith.addf %26, %11 : vector<4x1xf32>
    %cst_18 = arith.constant 0.000000e+00 : f32
    %28 = vector.broadcast %cst_18 : f32 to vector<4x1xf32>
    %29 = arith.subf %28, %27 : vector<4x1xf32>
    %30 = math.exp %29 : vector<4x1xf32>
    %cst_19 = arith.constant 1.000000e+00 : f32
    %31 = vector.broadcast %cst_19 : f32 to vector<4x1xf32>
    %32 = arith.addf %31, %30 : vector<4x1xf32>
    %cst_20 = arith.constant 1.000000e+00 : f32
    %33 = vector.broadcast %cst_20 : f32 to vector<4x1xf32>
    %34 = arith.divf %33, %32 : vector<4x1xf32>
    %c0_21 = arith.constant 0 : index
    %c0_22 = arith.constant 0 : index
    %c0_23 = arith.constant 0 : index
    %35 = vector.load %arg1[%c0_21, %c0_22, %c0_23] : memref<1x4x256xf32, #tpu.memory_space<vmem>>, vector<1x4x256xf32>
    %36 = vector.shape_cast %35 : vector<1x4x256xf32> to vector<4x256xf32>
    %37 = vector.broadcast %34 : vector<4x1xf32> to vector<4x256xf32>
    %38 = arith.mulf %36, %37 : vector<4x256xf32>
    %c0_24 = arith.constant 0 : index
    %c0_25 = arith.constant 0 : index
    %c0_26 = arith.constant 0 : index
    %39 = vector.load %arg6[%c0_24, %c0_25, %c0_26] : memref<1x4x256xf32, #tpu.memory_space<vmem>>, vector<1x4x256xf32>
    %40 = vector.shape_cast %39 : vector<1x4x256xf32> to vector<4x256xf32>
    %41 = vector.shape_cast %38 : vector<4x256xf32> to vector<1x4x256xf32>
    tpu.vector_store %arg6[%c0_24, %c0_25, %c0_26], %41 {strides = array<i32>} : memref<1x4x256xf32, #tpu.memory_space<vmem>>, vector<1x4x256xf32>,
    return
  }
  func.func @transform_0(%arg0: i32) -> (i32, i32, i32) {
    %c0_i32 = arith.constant 0 : i32
    %c0_i32_0 = arith.constant 0 : i32
    %c0_i32_1 = arith.constant 0 : i32
    return %arg0, %c0_i32, %c0_i32_0 : i32, i32, i32
  }
  func.func @transform_1(%arg0: i32) -> (i32, i32) {
    %c0_i32 = arith.constant 0 : i32
    %c0_i32_0 = arith.constant 0 : i32
    %c0_i32_1 = arith.constant 0 : i32
    return %c0_i32, %c0_i32_0 : i32, i32
  }
  func.func @transform_2(%arg0: i32) -> (i32, i32) {
    %c0_i32 = arith.constant 0 : i32
    %c0_i32_0 = arith.constant 0 : i32
    %c0_i32_1 = arith.constant 0 : i32
    return %c0_i32, %c0_i32_0 : i32, i32
  }
  func.func @transform_3(%arg0: i32) -> (i32, i32) {
    %c0_i32 = arith.constant 0 : i32
    %c0_i32_0 = arith.constant 0 : i32
    %c0_i32_1 = arith.constant 0 : i32
    return %c0_i32, %c0_i32_0 : i32, i32
  }
  func.func @transform_4(%arg0: i32) -> (i32, i32) {
    %c0_i32 = arith.constant 0 : i32
    %c0_i32_0 = arith.constant 0 : i32
    %c0_i32_1 = arith.constant 0 : i32
    return %c0_i32, %c0_i32_0 : i32, i32
  }
  func.func @transform_5(%arg0: i32) -> (i32, i32, i32) {
    %c0_i32 = arith.constant 0 : i32
    %c0_i32_0 = arith.constant 0 : i32
    %c0_i32_1 = arith.constant 0 : i32
    return %arg0, %c0_i32, %c0_i32_0 : i32, i32, i32
  }
}

</mosaic_0001>

<llo_original>
// kernel: tpu_custom_call.1
$region0: #{tpu_custom_call.1}
  #allocation0 [shape = 'u32[]', space=smem, size = 0x4, offset = 0x4, fixed_abs, tag = 'smem constant byte address 0x4 - core index']
  #allocation1 [shape = 'u32[72,128]{1,0:T(1,128)}', space=vmem, size = 0x9000, scoped, tag = 'internal scratch']
  %s0 = inlined_call_operand.hbm [shape: f32[2,4,256], index: 0, kind: input, shape index: {}]
  %s1 = inlined_call_operand.vmem [shape: f32[2,4], index: 1, kind: input, shape index: {}]
  %s2 = inlined_call_operand.vmem [shape: f32[2,1], index: 2, kind: input, shape index: {}]
  %s3 = inlined_call_operand.vmem [shape: f32[4,2], index: 3, kind: input, shape index: {}]
  %s4 = inlined_call_operand.vmem [shape: f32[4,1], index: 4, kind: input, shape index: {}]
  %s5 = inlined_call_operand.hbm [shape: f32[2,4,256], index: 5, kind: output, shape index: {}]
  %s6 = sld [smem:[#allocation0]]
  $region57: #{tpu_custom_call.1} parent=0
    _
  %s8 = ssub.s32 1, %s6
  %s9 = scalar_select 0, %s8, %s6
  $region1: #{tpu_custom_call.1} parent=0
    #allocation2 [shape = 'u8[8192]{0}', space=vmem, size = 0x2000, scoped, tag = 'input window, operand 0']
    #allocation3 [shape = 's32[2]{0}', space=sflag, size = 0x8, scoped, tag = 'scoped memory for tpu_custom_call.1']
    #allocation4 [shape = 's32[2]{0}', space=sflag, size = 0x8, scoped, tag = 'scoped memory for tpu_custom_call.1']
    #allocation5 [shape = 'u8[8192]{0}', space=vmem, size = 0x2000, scoped, tag = 'output window, operand 0']
    %10 = vsyncpa [#allocation3], 0
    %s11 = scalar_lea.sflag [#allocation3], 1
    %12 = vsyncpa %s11, 0
    %13 = vsyncpa [#allocation4], 0
    %s14 = scalar_lea.sflag [#allocation4], 1
    %15 = vsyncpa %s14, 0
    loop: start=0, step=1, limit=4
    $region2: #{tpu_custom_call.1} parent=1 // loop_pre_header
      _
    $region3: #{tpu_custom_call.1} parent=1 // loop_header
      %s17 = sphi 0, %s21
      %p18 = scmp.ge.s32.totalorder %s17, 4
      %s27 = sphi 0, %s29
      %s30 = sphi 0, %s27
      %s31 = sphi 0, %s30
      %s47 = sphi 0, %s31
      %s51 = sphi 0, %s51
      %s53 = sphi 0, %s51
      %s54 = sphi 0, %s53
      %s68 = sphi 0, %s54
      %s72 = sphi 0, %s72
      %s74 = sphi 0, %s72
      %s75 = sphi 0, %s74
      %s89 = sphi 0, %s75
      %s93 = sphi 0, %s93
      %s95 = sphi 0, %s93
      %s96 = sphi 0, %s95
      %s110 = sphi 0, %s96
      %s114 = sphi 0, %s114
      %s116 = sphi 0, %s114
      %s117 = sphi 0, %s116
      %s131 = sphi 0, %s117
      %s137 = sphi 0, %s139
      %s140 = sphi 0, %s137
      %s141 = sphi 0, %s140
      %s157 = sphi 0, %s141
    $region4: #{tpu_custom_call.1} parent=1 // loop_header_branch
      %20 = sbr.rel (%p18) target = $region8
    $region5: #{tpu_custom_call.1} parent=1 // loop_body
      %s22 = ssub.s32 %s17, 1
      %s23 = ssub.s32 %s17, 2
      %s24 = sadd.s32 %s17, 1
      %s25 = ssub.s32 %s17, %s24
      %p26 = scmp.eq.s32.totalorder %s25, 0
      %s28 = sadd.s32 %s27, 1
      %s29 = scalar_select %p26, %s27, %s28
      %p32 = pneg %p26
      %p33 = scmp.eq.s32.totalorder %s17, 1
      %p34 = por %p32, %p33
      %p35 = scmp.ne.s32.totalorder %s27, %s30
      %p36 = scmp.eq.s32.totalorder %s17, 0
      %p37 = por %p35, %p36
      %p38 = scmp.ne.s32.totalorder %s27, %s30
      %p39 = scmp.eq.s32.totalorder %s22, 1
      %p40 = por %p38, %p39
      %p41 = scmp.ne.s32.totalorder %s30, %s31
      %p42 = scmp.eq.s32.totalorder %s22, 0
      %p43 = por %p41, %p42
      %p44 = scmp.ne.s32.totalorder %s30, %s31
      %p45 = scmp.eq.s32.totalorder %s23, 1
      %p46 = por %p44, %p45
      %p48 = scmp.ne.s32.totalorder %s31, %s47
      %p49 = scmp.eq.s32.totalorder %s23, 0
      %p50 = por %p48, %p49
      %s52 = sadd.s32 %s51, 1
      %p55 = scmp.eq.s32.totalorder %s17, 1
      %p56 = scmp.ne.s32.totalorder %s51, %s53
      %p57 = scmp.eq.s32.totalorder %s17, 0
      %p58 = por %p56, %p57
      %p59 = scmp.ne.s32.totalorder %s51, %s53
      %p60 = scmp.eq.s32.totalorder %s22, 1
      %p61 = por %p59, %p60
      %p62 = scmp.ne.s32.totalorder %s53, %s54
      %p63 = scmp.eq.s32.totalorder %s22, 0
      %p64 = por %p62, %p63
      %p65 = scmp.ne.s32.totalorder %s53, %s54
      %p66 = scmp.eq.s32.totalorder %s23, 1
      %p67 = por %p65, %p66
      %p69 = scmp.ne.s32.totalorder %s54, %s68
      %p70 = scmp.eq.s32.totalorder %s23, 0
      %p71 = por %p69, %p70
      %s73 = sadd.s32 %s72, 1
      %p76 = scmp.eq.s32.totalorder %s17, 1
      %p77 = scmp.ne.s32.totalorder %s72, %s74
      %p78 = scmp.eq.s32.totalorder %s17, 0
      %p79 = por %p77, %p78
      %p80 = scmp.ne.s32.totalorder %s72, %s74
      %p81 = scmp.eq.s32.totalorder %s22, 1
      %p82 = por %p80, %p81
      %p83 = scmp.ne.s32.totalorder %s74, %s75
      %p84 = scmp.eq.s32.totalorder %s22, 0
      %p85 = por %p83, %p84
      %p86 = scmp.ne.s32.totalorder %s74, %s75
      %p87 = scmp.eq.s32.totalorder %s23, 1
      %p88 = por %p86, %p87
      %p90 = scmp.ne.s32.totalorder %s75, %s89
      %p91 = scmp.eq.s32.totalorder %s23, 0
      %p92 = por %p90, %p91
      %s94 = sadd.s32 %s93, 1
      %p97 = scmp.eq.s32.totalorder %s17, 1
      %p98 = scmp.ne.s32.totalorder %s93, %s95
      %p99 = scmp.eq.s32.totalorder %s17, 0
      %p100 = por %p98, %p99
      %p101 = scmp.ne.s32.totalorder %s93, %s95
      %p102 = scmp.eq.s32.totalorder %s22, 1
      %p103 = por %p101, %p102
      %p104 = scmp.ne.s32.totalorder %s95, %s96
      %p105 = scmp.eq.s32.totalorder %s22, 0
      %p106 = por %p104, %p105
      %p107 = scmp.ne.s32.totalorder %s95, %s96
      %p108 = scmp.eq.s32.totalorder %s23, 1
      %p109 = por %p107, %p108
      %p111 = scmp.ne.s32.totalorder %s96, %s110
      %p112 = scmp.eq.s32.totalorder %s23, 0
      %p113 = por %p111, %p112
      %s115 = sadd.s32 %s114, 1
      %p118 = scmp.eq.s32.totalorder %s17, 1
      %p119 = scmp.ne.s32.totalorder %s114, %s116
      %p120 = scmp.eq.s32.totalorder %s17, 0
      %p121 = por %p119, %p120
      %p122 = scmp.ne.s32.totalorder %s114, %s116
      %p123 = scmp.eq.s32.totalorder %s22, 1
      %p124 = por %p122, %p123
      %p125 = scmp.ne.s32.totalorder %s116, %s117
      %p126 = scmp.eq.s32.totalorder %s22, 0
      %p127 = por %p125, %p126
      %p128 = scmp.ne.s32.totalorder %s116, %s117
      %p129 = scmp.eq.s32.totalorder %s23, 1
      %p130 = por %p128, %p129
      %p132 = scmp.ne.s32.totalorder %s117, %s131
      %p133 = scmp.eq.s32.totalorder %s23, 0
      %p134 = por %p132, %p133
      %s135 = ssub.s32 %s17, %s24
      %p136 = scmp.eq.s32.totalorder %s135, 0
      %s138 = sadd.s32 %s137, 1
      %s139 = scalar_select %p136, %s137, %s138
      %p142 = pneg %p136
      %p143 = scmp.eq.s32.totalorder %s17, 1
      %p144 = por %p142, %p143
      %p145 = scmp.ne.s32.totalorder %s137, %s140
      %p146 = scmp.eq.s32.totalorder %s17, 0
      %p147 = por %p145, %p146
      %p148 = scmp.ne.s32.totalorder %s137, %s140
      %p149 = scmp.eq.s32.totalorder %s22, 1
      %p150 = por %p148, %p149
      %p151 = scmp.ne.s32.totalorder %s140, %s141
      %p152 = scmp.eq.s32.totalorder %s22, 0
      %p153 = por %p151, %p152
      %p154 = scmp.ne.s32.totalorder %s140, %s141
      %p155 = scmp.eq.s32.totalorder %s23, 1
      %p156 = por %p154, %p155
      %p158 = scmp.ne.s32.totalorder %s141, %s157
      %p159 = scmp.eq.s32.totalorder %s23, 0
      %p160 = por %p158, %p159
      %p161 = scmp.le.s32.totalorder 1, %s17
      %p162 = scmp.lt.s32.totalorder %s17, 3
      %p163 = pnand %p161, %p162
      %p164 = pneg %p163
      // Predicated region
      $region9: #{tpu_custom_call.1} parent=5 // pred_check
        _
      $region10: #{tpu_custom_call.1} parent=5 // pred_check_branch
        %166 = sbr.rel (%p163) target = $region12
      $region11: #{tpu_custom_call.1} parent=5 // pred_region
        %s167 = ssub.s32 %s17, 1
        // Predicated region
        $region13: #{tpu_custom_call.1} parent=11 // pred_check
          %p168 = pneg %p64
        $region14: #{tpu_custom_call.1} parent=11 // pred_check_branch
          %170 = sbr.rel (%p168) target = $region16
        $region15: #{tpu_custom_call.1} parent=11 // pred_region
          _
        $region16: #{tpu_custom_call.1} parent=11 // pred_fallthru
          _
        // Predicated region
        $region17: #{tpu_custom_call.1} parent=11 // pred_check
          %p171 = pneg %p85
        $region18: #{tpu_custom_call.1} parent=11 // pred_check_branch
          %173 = sbr.rel (%p171) target = $region20
        $region19: #{tpu_custom_call.1} parent=11 // pred_region
          _
        $region20: #{tpu_custom_call.1} parent=11 // pred_fallthru
          _
        // Predicated region
        $region21: #{tpu_custom_call.1} parent=11 // pred_check
          %p174 = pneg %p106
        $region22: #{tpu_custom_call.1} parent=11 // pred_check_branch
          %176 = sbr.rel (%p174) target = $region24
        $region23: #{tpu_custom_call.1} parent=11 // pred_region
          _
        $region24: #{tpu_custom_call.1} parent=11 // pred_fallthru
          _
        // Predicated region
        $region25: #{tpu_custom_call.1} parent=11 // pred_check
          %p177 = pneg %p127
        $region26: #{tpu_custom_call.1} parent=11 // pred_check_branch
          %179 = sbr.rel (%p177) target = $region28
        $region27: #{tpu_custom_call.1} parent=11 // pred_region
          _
        $region28: #{tpu_custom_call.1} parent=11 // pred_fallthru
          _
      $region12: #{tpu_custom_call.1} parent=5 // pred_fallthru
        _
      %p180 = scmp.lt.s32.totalorder %s17, 2
      // Predicated region
      $region29: #{tpu_custom_call.1} parent=5 // pred_check
        %p181 = pneg %p180
      $region30: #{tpu_custom_call.1} parent=5 // pred_check_branch
        %183 = sbr.rel (%p181) target = $region32
      $region31: #{tpu_custom_call.1} parent=5 // pred_region
        // Predicated region
        $region33: #{tpu_custom_call.1} parent=31 // pred_check
          %p184 = pneg %p37
        $region34: #{tpu_custom_call.1} parent=31 // pred_check_branch
          %186 = sbr.rel (%p184) target = $region36
        $region35: #{tpu_custom_call.1} parent=31 // pred_region
          %s187 = sand.u32 %s27, 1
          %s188 = scalar_lea.sflag [#allocation3], %s187
          %s189 = sand.u32 %s27, 1
          %s190 = smul.addr %s189, 8
          %s191 = scalar_lea.vmem [#allocation2], %s190
          %193 = vsyncadd %s188, 0
          %s194 = smul.addr %s17, 2
          %s195 = smul.addr %s194, 4
          %s196 = scalar_lea.hbm %s0, %s195
          %s198 = sshll.u32 %s196, 4
          %s199 = int_to_ptr.hbm [resolvable:$true] %s198
          %s200 = sshll.u32 %s191, 4
          %s201 = int_to_ptr.vmem [resolvable:$true] %s200
          %203 = dma.hbm_to_vmem [thread:$0]  %s199, 128, %s201, %s188
        $region36: #{tpu_custom_call.1} parent=31 // pred_fallthru
          _
      $region32: #{tpu_custom_call.1} parent=5 // pred_fallthru
        _
      %p204 = scmp.le.s32.totalorder 1, %s17
      %p205 = scmp.lt.s32.totalorder %s17, 3
      %p206 = pnand %p204, %p205
      %p207 = pneg %p206
      // Predicated region
      $region37: #{tpu_custom_call.1} parent=5 // pred_check
        _
      $region38: #{tpu_custom_call.1} parent=5 // pred_check_branch
        %209 = sbr.rel (%p206) target = $region40
      $region39: #{tpu_custom_call.1} parent=5 // pred_region
        %s210 = ssub.s32 %s17, 1
        %s211 = sand.u32 %s30, 1
        %s212 = scalar_lea.sflag [#allocation3], %s211
        %s213 = sand.u32 %s30, 1
        %s214 = smul.addr %s213, 8
        %s215 = scalar_lea.vmem [#allocation2], %s214
        // Predicated region
        $region41: #{tpu_custom_call.1} parent=39 // pred_check
          %p216 = pneg %p43
        $region42: #{tpu_custom_call.1} parent=39 // pred_check_branch
          %218 = sbr.rel (%p216) target = $region44
        $region43: #{tpu_custom_call.1} parent=39 // pred_region
          %220 = dma.done %s212, 128
        $region44: #{tpu_custom_call.1} parent=39 // pred_fallthru
          _
        %s221 = sand.u32 %s30, 1
        %s222 = scalar_lea.sflag [#allocation3], %s221
        %s223 = sand.u32 %s30, 1
        %s224 = smul.addr %s223, 8
        %s225 = scalar_lea.vmem [#allocation2], %s224
        %p226 = pneg %p43
        %p227 = pneg %p40
        %p228 = pneg %p64
        %p229 = pneg %p61
        %p230 = pneg %p85
        %p231 = pneg %p82
        %p232 = pneg %p106
        %p233 = pneg %p103
        %p234 = pneg %p127
        %p235 = pneg %p124
        %p236 = pneg %p153
        %p237 = pneg %p150
        %s238 = sand.u32 %s140, 1
        %s239 = scalar_lea.sflag [#allocation4], %s238
        %s240 = sand.u32 %s140, 1
        %s241 = smul.addr %s240, 8
        %s242 = scalar_lea.vmem [#allocation5], %s241
        %v243 = vld [vmem:[%s215] sm:$0xff]
        %245 = vst [vmem:[#allocation1] ss:$2 sm:$0xff] %v243
        %v246 = vld.sshfl [vmem:[#allocation1] sm:$0xff pattern:$0x75316420]
        %v247 = vld.sshfl [vmem:[#allocation1 + $0x8] sm:$0xff pattern:$0x75316420]
        %vm250 = vcmask 1043456
        %v251 = vsel %vm250, %v246, 0.0
        %v252 = vsel %vm250, %v247, 0.0
        %v253 = vadd.f32 %v251, %v252
        %254 = vadd.xlane.f32.xlu0 %v253
        %v255 = vpop.xlane.xlu0 %254
        %v256 = vadd.f32 %v255, 0.0
        %v257 = vmul.f32 %v256, 0.00390625
        %v258 = vld [vmem:[%s1] sm:$0x3]
        %v259 = vld [vmem:[%s2] sm:$0x3]
        %v260 = vld [vmem:[%s3] sm:$0xf]
        %v261 = vld [vmem:[%s4] sm:$0xf]
        %vm262 = vcmask 31744
        %v264 = vsel %vm262, %v258, 0
        %v267 = vsel %vm250, %v257, 0
        %269 = vmatpush.msra.mxu0 0.0
        %270 = vmatpush.msra.mxu0 0.0
        %271 = vmatpush.msra.mxu0 0.0
        %272 = vmatpush.msra.mxu0 0.0
        %273 = vmatpush.msra.mxu0 0.0
        %274 = vmatpush.msra.mxu0 0.0
        %275 = vmatpush.msra.mxu0 0.0
        %276 = vmatpush.msra.mxu0 0.0
        %277 = vmatpush.msra.mxu0 0.0
        %278 = vmatpush.msra.mxu0 0.0
        %279 = vmatpush.msra.mxu0 0.0
        %280 = vmatpush.msra.mxu0 0.0
        %281 = vmatpush.msra.mxu0 0.0
        %282 = vmatpush.msra.mxu0 0.0
        %283 = vmatpush.msra.mxu0 0.0
        %v284 = vand.u32 %v267, 4294901760
        %285 = vmatpush.msra.mxu0 %v284
        %v286 = vand.u32 %v264, 4294901760
        %v287 = vsub.f32 %v264, %v286
        %v288 = vand.u32 %v287, 4294901760
        %v289 = vsub.f32 %v287, %v288
        %v290 = vand.u32 %v289, 4294901760
        %291 = vmatmul.f32.gmra.mxu0 %v290
        %v292 = vpop.f32.mrf.mxu0
        %v293 = vadd.f32 %v259, %v292
        %294 = vdwg.mxu0
        %295 = vmatpush.msra.mxu0 0.0
        %296 = vmatpush.msra.mxu0 0.0
        %297 = vmatpush.msra.mxu0 0.0
        %298 = vmatpush.msra.mxu0 0.0
        %299 = vmatpush.msra.mxu0 0.0
        %300 = vmatpush.msra.mxu0 0.0
        %301 = vmatpush.msra.mxu0 0.0
        %302 = vmatpush.msra.mxu0 0.0
        %303 = vmatpush.msra.mxu0 0.0
        %304 = vmatpush.msra.mxu0 0.0
        %305 = vmatpush.msra.mxu0 0.0
        %306 = vmatpush.msra.mxu0 0.0
        %307 = vmatpush.msra.mxu0 0.0
        %308 = vmatpush.msra.mxu0 0.0
        %309 = vmatpush.msra.mxu0 0.0
        %v310 = vand.u32 %v267, 4294901760
        %v311 = vsub.f32 %v267, %v310
        %v312 = vand.u32 %v311, 4294901760
        %v313 = vsub.f32 %v311, %v312
        %v314 = vand.u32 %v313, 4294901760
        %315 = vmatpush.msra.mxu0 %v314
        %v316 = vand.u32 %v264, 4294901760
        %317 = vmatmul.f32.gmra.mxu0 %v316
        %v318 = vpop.f32.mrf.mxu0
        %v319 = vadd.f32 %v293, %v318
        %320 = vdwg.mxu0
        %321 = vmatpush.msra.mxu0 0.0
        %322 = vmatpush.msra.mxu0 0.0
        %323 = vmatpush.msra.mxu0 0.0
        %324 = vmatpush.msra.mxu0 0.0
        %325 = vmatpush.msra.mxu0 0.0
        %326 = vmatpush.msra.mxu0 0.0
        %327 = vmatpush.msra.mxu0 0.0
        %328 = vmatpush.msra.mxu0 0.0
        %329 = vmatpush.msra.mxu0 0.0
        %330 = vmatpush.msra.mxu0 0.0
        %331 = vmatpush.msra.mxu0 0.0
        %332 = vmatpush.msra.mxu0 0.0
        %333 = vmatpush.msra.mxu0 0.0
        %334 = vmatpush.msra.mxu0 0.0
        %335 = vmatpush.msra.mxu0 0.0
        %v336 = vand.u32 %v267, 4294901760
        %v337 = vsub.f32 %v267, %v336
        %338 = vmatpush.msra.mxu0 %v337
        %v339 = vand.u32 %v264, 4294901760
        %v340 = vsub.f32 %v264, %v339
        %341 = vmatmul.f32.gmra.mxu0 %v340
        %v342 = vpop.f32.mrf.mxu0
        %v343 = vadd.f32 %v319, %v342
        %344 = vdwg.mxu0
        %345 = vmatpush.msra.mxu0 0.0
        %346 = vmatpush.msra.mxu0 0.0
        %347 = vmatpush.msra.mxu0 0.0
        %348 = vmatpush.msra.mxu0 0.0
        %349 = vmatpush.msra.mxu0 0.0
        %350 = vmatpush.msra.mxu0 0.0
        %351 = vmatpush.msra.mxu0 0.0
        %352 = vmatpush.msra.mxu0 0.0
        %353 = vmatpush.msra.mxu0 0.0
        %354 = vmatpush.msra.mxu0 0.0
        %355 = vmatpush.msra.mxu0 0.0
        %356 = vmatpush.msra.mxu0 0.0
        %357 = vmatpush.msra.mxu0 0.0
        %358 = vmatpush.msra.mxu0 0.0
        %359 = vmatpush.msra.mxu0 0.0
        %v360 = vand.u32 %v267, 4294901760
        %361 = vmatpush.msra.mxu0 %v360
        %v362 = vand.u32 %v264, 4294901760
        %v363 = vsub.f32 %v264, %v362
        %v364 = vand.u32 %v363, 4294901760
        %365 = vmatmul.f32.gmra.mxu0 %v364
        %v366 = vpop.f32.mrf.mxu0
        %v367 = vadd.f32 %v343, %v366
        %368 = vdwg.mxu0
        %369 = vmatpush.msra.mxu0 0.0
        %370 = vmatpush.msra.mxu0 0.0
        %371 = vmatpush.msra.mxu0 0.0
        %372 = vmatpush.msra.mxu0 0.0
        %373 = vmatpush.msra.mxu0 0.0
        %374 = vmatpush.msra.mxu0 0.0
        %375 = vmatpush.msra.mxu0 0.0
        %376 = vmatpush.msra.mxu0 0.0
        %377 = vmatpush.msra.mxu0 0.0
        %378 = vmatpush.msra.mxu0 0.0
        %379 = vmatpush.msra.mxu0 0.0
        %380 = vmatpush.msra.mxu0 0.0
        %381 = vmatpush.msra.mxu0 0.0
        %382 = vmatpush.msra.mxu0 0.0
        %383 = vmatpush.msra.mxu0 0.0
        %v384 = vand.u32 %v267, 4294901760
        %v385 = vsub.f32 %v267, %v384
        %v386 = vand.u32 %v385, 4294901760
        %387 = vmatpush.msra.mxu0 %v386
        %v388 = vand.u32 %v264, 4294901760
        %389 = vmatmul.f32.gmra.mxu0 %v388
        %v390 = vpop.f32.mrf.mxu0
        %v391 = vadd.f32 %v367, %v390
        %392 = vdwg.mxu0
        %393 = vmatpush.msra.mxu0 0.0
        %394 = vmatpush.msra.mxu0 0.0
        %395 = vmatpush.msra.mxu0 0.0
        %396 = vmatpush.msra.mxu0 0.0
        %397 = vmatpush.msra.mxu0 0.0
        %398 = vmatpush.msra.mxu0 0.0
        %399 = vmatpush.msra.mxu0 0.0
        %400 = vmatpush.msra.mxu0 0.0
        %401 = vmatpush.msra.mxu0 0.0
        %402 = vmatpush.msra.mxu0 0.0
        %403 = vmatpush.msra.mxu0 0.0
        %404 = vmatpush.msra.mxu0 0.0
        %405 = vmatpush.msra.mxu0 0.0
        %406 = vmatpush.msra.mxu0 0.0
        %407 = vmatpush.msra.mxu0 0.0
        %v408 = vand.u32 %v267, 4294901760
        %409 = vmatpush.msra.mxu0 %v408
        %v410 = vand.u32 %v264, 4294901760
        %411 = vmatmul.f32.gmra.mxu0 %v410
        %v412 = vpop.f32.mrf.mxu0
        %v413 = vadd.f32 %v391, %v412
        %414 = vdwg.mxu0
        %vm415 = vcmp.gt.f32.partialorder %v413, 0.0
        %v416 = vmin.f32 %v413, 0.0
        %v417 = vmul.f32 %v416, 0.5
        %v418 = vtanh.pop %v417
        %v419 = vmul.f32 %v416, 1.442695
        %v420 = vpow.pop %v419
        %v421 = vadd.f32 %v420, 1.0
        %v422 = vmul.f32 %v418, %v421
        %v423 = vsel %vm415, %v413, %v422
        %vm424 = vcmask 15360
        %v426 = vsel %vm424, %v260, 0
        %vm428 = vcmask 1041408
        %v430 = vsel %vm428, %v423, 0
        %432 = vmatpush.msra.mxu0 0.0
        %433 = vmatpush.msra.mxu0 0.0
        %434 = vmatpush.msra.mxu0 0.0
        %435 = vmatpush.msra.mxu0 0.0
        %436 = vmatpush.msra.mxu0 0.0
        %437 = vmatpush.msra.mxu0 0.0
        %438 = vmatpush.msra.mxu0 0.0
        %439 = vmatpush.msra.mxu0 0.0
        %440 = vmatpush.msra.mxu0 0.0
        %441 = vmatpush.msra.mxu0 0.0
        %442 = vmatpush.msra.mxu0 0.0
        %443 = vmatpush.msra.mxu0 0.0
        %444 = vmatpush.msra.mxu0 0.0
        %445 = vmatpush.msra.mxu0 0.0
        %446 = vmatpush.msra.mxu0 0.0
        %v447 = vand.u32 %v430, 4294901760
        %448 = vmatpush.msra.mxu0 %v447
        %v449 = vand.u32 %v426, 4294901760
        %v450 = vsub.f32 %v426, %v449
        %v451 = vand.u32 %v450, 4294901760
        %v452 = vsub.f32 %v450, %v451
        %v453 = vand.u32 %v452, 4294901760
        %454 = vmatmul.f32.gmra.mxu0 %v453
        %v455 = vpop.f32.mrf.mxu0
        %v456 = vadd.f32 %v261, %v455
        %457 = vdwg.mxu0
        %458 = vmatpush.msra.mxu0 0.0
        %459 = vmatpush.msra.mxu0 0.0
        %460 = vmatpush.msra.mxu0 0.0
        %461 = vmatpush.msra.mxu0 0.0
        %462 = vmatpush.msra.mxu0 0.0
        %463 = vmatpush.msra.mxu0 0.0
        %464 = vmatpush.msra.mxu0 0.0
        %465 = vmatpush.msra.mxu0 0.0
        %466 = vmatpush.msra.mxu0 0.0
        %467 = vmatpush.msra.mxu0 0.0
        %468 = vmatpush.msra.mxu0 0.0
        %469 = vmatpush.msra.mxu0 0.0
        %470 = vmatpush.msra.mxu0 0.0
        %471 = vmatpush.msra.mxu0 0.0
        %472 = vmatpush.msra.mxu0 0.0
        %v473 = vand.u32 %v430, 4294901760
        %v474 = vsub.f32 %v430, %v473
        %v475 = vand.u32 %v474, 4294901760
        %v476 = vsub.f32 %v474, %v475
        %v477 = vand.u32 %v476, 4294901760
        %478 = vmatpush.msra.mxu0 %v477
        %v479 = vand.u32 %v426, 4294901760
        %480 = vmatmul.f32.gmra.mxu0 %v479
        %v481 = vpop.f32.mrf.mxu0
        %v482 = vadd.f32 %v456, %v481
        %483 = vdwg.mxu0
        %484 = vmatpush.msra.mxu0 0.0
        %485 = vmatpush.msra.mxu0 0.0
        %486 = vmatpush.msra.mxu0 0.0
        %487 = vmatpush.msra.mxu0 0.0
        %488 = vmatpush.msra.mxu0 0.0
        %489 = vmatpush.msra.mxu0 0.0
        %490 = vmatpush.msra.mxu0 0.0
        %491 = vmatpush.msra.mxu0 0.0
        %492 = vmatpush.msra.mxu0 0.0
        %493 = vmatpush.msra.mxu0 0.0
        %494 = vmatpush.msra.mxu0 0.0
        %495 = vmatpush.msra.mxu0 0.0
        %496 = vmatpush.msra.mxu0 0.0
        %497 = vmatpush.msra.mxu0 0.0
        %498 = vmatpush.msra.mxu0 0.0
        %v499 = vand.u32 %v430, 4294901760
        %v500 = vsub.f32 %v430, %v499
        %501 = vmatpush.msra.mxu0 %v500
        %v502 = vand.u32 %v426, 4294901760
        %v503 = vsub.f32 %v426, %v502
        %504 = vmatmul.f32.gmra.mxu0 %v503
        %v505 = vpop.f32.mrf.mxu0
        %v506 = vadd.f32 %v482, %v505
        %507 = vdwg.mxu0
        %508 = vmatpush.msra.mxu0 0.0
        %509 = vmatpush.msra.mxu0 0.0
        %510 = vmatpush.msra.mxu0 0.0
        %511 = vmatpush.msra.mxu0 0.0
        %512 = vmatpush.msra.mxu0 0.0
        %513 = vmatpush.msra.mxu0 0.0
        %514 = vmatpush.msra.mxu0 0.0
        %515 = vmatpush.msra.mxu0 0.0
        %516 = vmatpush.msra.mxu0 0.0
        %517 = vmatpush.msra.mxu0 0.0
        %518 = vmatpush.msra.mxu0 0.0
        %519 = vmatpush.msra.mxu0 0.0
        %520 = vmatpush.msra.mxu0 0.0
        %521 = vmatpush.msra.mxu0 0.0
        %522 = vmatpush.msra.mxu0 0.0
        %v523 = vand.u32 %v430, 4294901760
        %524 = vmatpush.msra.mxu0 %v523
        %v525 = vand.u32 %v426, 4294901760
        %v526 = vsub.f32 %v426, %v525
        %v527 = vand.u32 %v526, 4294901760
        %528 = vmatmul.f32.gmra.mxu0 %v527
        %v529 = vpop.f32.mrf.mxu0
        %v530 = vadd.f32 %v506, %v529
        %531 = vdwg.mxu0
        %532 = vmatpush.msra.mxu0 0.0
        %533 = vmatpush.msra.mxu0 0.0
        %534 = vmatpush.msra.mxu0 0.0
        %535 = vmatpush.msra.mxu0 0.0
        %536 = vmatpush.msra.mxu0 0.0
        %537 = vmatpush.msra.mxu0 0.0
        %538 = vmatpush.msra.mxu0 0.0
        %539 = vmatpush.msra.mxu0 0.0
        %540 = vmatpush.msra.mxu0 0.0
        %541 = vmatpush.msra.mxu0 0.0
        %542 = vmatpush.msra.mxu0 0.0
        %543 = vmatpush.msra.mxu0 0.0
        %544 = vmatpush.msra.mxu0 0.0
        %545 = vmatpush.msra.mxu0 0.0
        %546 = vmatpush.msra.mxu0 0.0
        %v547 = vand.u32 %v430, 4294901760
        %v548 = vsub.f32 %v430, %v547
        %v549 = vand.u32 %v548, 4294901760
        %550 = vmatpush.msra.mxu0 %v549
        %v551 = vand.u32 %v426, 4294901760
        %552 = vmatmul.f32.gmra.mxu0 %v551
        %v553 = vpop.f32.mrf.mxu0
        %v554 = vadd.f32 %v530, %v553
        %555 = vdwg.mxu0
        %556 = vmatpush.msra.mxu0 0.0
        %557 = vmatpush.msra.mxu0 0.0
        %558 = vmatpush.msra.mxu0 0.0
        %559 = vmatpush.msra.mxu0 0.0
        %560 = vmatpush.msra.mxu0 0.0
        %561 = vmatpush.msra.mxu0 0.0
        %562 = vmatpush.msra.mxu0 0.0
        %563 = vmatpush.msra.mxu0 0.0
        %564 = vmatpush.msra.mxu0 0.0
        %565 = vmatpush.msra.mxu0 0.0
        %566 = vmatpush.msra.mxu0 0.0
        %567 = vmatpush.msra.mxu0 0.0
        %568 = vmatpush.msra.mxu0 0.0
        %569 = vmatpush.msra.mxu0 0.0
        %570 = vmatpush.msra.mxu0 0.0
        %v571 = vand.u32 %v430, 4294901760
        %572 = vmatpush.msra.mxu0 %v571
        %v573 = vand.u32 %v426, 4294901760
        %574 = vmatmul.f32.gmra.mxu0 %v573
        %v575 = vpop.f32.mrf.mxu0
        %v576 = vadd.f32 %v554, %v575
        %577 = vdwg.mxu0
        %v578 = vsub.f32 0.0, %v576
        %v579 = vmul.f32 %v578, 1.442695
        %v580 = vpow.pop %v579
        %v581 = vadd.f32 %v580, 1.0
        %v582 = vrcp.pop %v581
        %v583 = vmul.f32 %v581, %v582
        %v584 = vsub.f32 1.0, %v583
        %v585 = vmul.f32 %v582, %v584
        %v586 = vadd.f32 %v582, %v585
        %vm587 = vweird.f32 %v581
        %vm588 = vweird.f32 %v582
        %vm589 = vmor %vm587, %vm588
        %v590 = vsel %vm589, %v582, %v586
        %v591 = vand.u32 2147483647, %v581
        %vm592 = vcmp.eq.f32.partialorder %v591, 8.507059e+37
        %v593 = vand.u32 %v581, 2147483648
        %v594 = vor.u32 1.1754944e-38, %v593
        %v595 = vsel %vm592, %v594, %v590
        %v596 = vmul.f32 1.0, %v595
        %598 = vset.pattern.permute.xlu0 0
        %599 = vperm.xlu0 %598, %v596
        %v600 = vpop.permute.xlu0 %599
        %v602 = vunpack.c.l.s4 839922192
        %v603 = vunpack.c.0.s8 %v602
        %v604 = vperm.slane %v600, %v603
        %v606 = vmul.f32 %v243, %v604
        %607 = vst [vmem:[%s242] sm:$0xff] %v606
        %s608 = sand.u32 %s140, 1
        %s609 = scalar_lea.sflag [#allocation4], %s608
        %s610 = sand.u32 %s140, 1
        %s611 = smul.addr %s610, 8
        %s612 = scalar_lea.vmem [#allocation5], %s611
        // Predicated region
        $region45: #{tpu_custom_call.1} parent=39 // pred_check
          %p613 = pneg %p150
        $region46: #{tpu_custom_call.1} parent=39 // pred_check_branch
          %615 = sbr.rel (%p613) target = $region48
        $region47: #{tpu_custom_call.1} parent=39 // pred_region
          %617 = vsyncadd %s609, 0
          %s618 = smul.addr %s22, 2
          %s619 = smul.addr %s618, 4
          %s620 = scalar_lea.hbm %s5, %s619
          %s622 = sshll.u32 %s612, 4
          %s623 = int_to_ptr.vmem [resolvable:$true] %s622
          %s624 = sshll.u32 %s620, 4
          %s625 = int_to_ptr.hbm [resolvable:$true] %s624
          %627 = dma.vmem_to_hbm [thread:$0]  %s623, 128, %s625, %s609
        $region48: #{tpu_custom_call.1} parent=39 // pred_fallthru
          _
      $region40: #{tpu_custom_call.1} parent=5 // pred_fallthru
        _
      %p628 = scmp.le.s32.totalorder 2, %s17
      // Predicated region
      $region49: #{tpu_custom_call.1} parent=5 // pred_check
        %p629 = pneg %p628
      $region50: #{tpu_custom_call.1} parent=5 // pred_check_branch
        %631 = sbr.rel (%p629) target = $region52
      $region51: #{tpu_custom_call.1} parent=5 // pred_region
        %s632 = ssub.s32 %s17, 2
        // Predicated region
        $region53: #{tpu_custom_call.1} parent=51 // pred_check
          %p633 = pneg %p156
        $region54: #{tpu_custom_call.1} parent=51 // pred_check_branch
          %635 = sbr.rel (%p633) target = $region56
        $region55: #{tpu_custom_call.1} parent=51 // pred_region
          %s636 = sand.u32 %s141, 1
          %s637 = scalar_lea.sflag [#allocation4], %s636
          %s638 = sand.u32 %s141, 1
          %s639 = smul.addr %s638, 8
          %s640 = scalar_lea.vmem [#allocation5], %s639
          %642 = dma.done %s637, 128
        $region56: #{tpu_custom_call.1} parent=51 // pred_fallthru
          _
      $region52: #{tpu_custom_call.1} parent=5 // pred_fallthru
        _
    $region6: #{tpu_custom_call.1} parent=1 // loop_footer
      %s21 = sadd.s32 1, %s17
    $region7: #{tpu_custom_call.1} parent=1 // loop_footer_branch
      %16 = sbr.rel target = $region3
    $region8: #{tpu_custom_call.1} parent=1 // loop_exit
      _
    %643 = vsyncpa [#allocation3], 1
    %s644 = scalar_lea.sflag [#allocation3], 1
    %645 = vsyncpa %s644, 1
    %646 = vsyncpa [#allocation4], 1
    %s647 = scalar_lea.sflag [#allocation4], 1
    %648 = vsyncpa %s647, 1

</llo_original>
